<compile_context>
chip_gen: v5e
topology: v5e:2x2
jax: 0.10.0
libtpu: 0.0.40
codegen_flags: <defaults>
</compile_context>

<pallas_src>
import jax
import jax.numpy as jnp
import numpy as np
from jax.experimental import pallas as pl
from jax.experimental.pallas import tpu as pltpu


def _conv_patch_matmul_kernel(w_ref, b_ref, p_ref, o_ref):
    # w_ref: (Cout, K)   conv weight flattened over (Cin, kd, kh, kw)
    # b_ref: (Cout, 1)   conv bias (f32)
    # p_ref: (K, tM)     input patches for this M tile
    # o_ref: (Cout, tM)  output tile
    acc = jnp.dot(w_ref[...], p_ref[...],
                  preferred_element_type=jnp.float32)        # (Cout, tM) f32
    acc = acc + b_ref[...]                                   # broadcast over lanes
    o_ref[...] = jnp.maximum(acc, 0.0).astype(o_ref.dtype)   # fused ReLU + cast


def _round_up(a, b):
    return (a + b - 1) // b * b


def downsampling_conv_block(x, weight, bias, stride=2):
    """x: (B, Cin, D, H, W); weight: (Cout, Cin, k, k, k); bias: (Cout,)."""
    k = stride
    B, Cin, D, H, W = x.shape
    Cout = weight.shape[0]
    Do, Ho, Wo = D // k, H // k, W // k

    # PyTorch floor-drops any remainder when the spatial dims aren't divisible.
    x = x[:, :, :Do * k, :Ho * k, :Wo * k]

    # Extract non-overlapping (k,k,k) patches -> (K, M) with K last-ordering
    # matching weight.reshape(Cout, Cin*k*k*k).
    xp = x.reshape(B, Cin, Do, k, Ho, k, Wo, k)
    xp = xp.transpose(1, 3, 5, 7, 0, 2, 4, 6)        # (Cin, kd, kh, kw, B, Do, Ho, Wo)
    K = Cin * k * k * k
    M = B * Do * Ho * Wo
    patches = xp.reshape(K, M)

    w_mat = jnp.asarray(weight, x.dtype).reshape(Cout, K)    # (Cout, K)
    b_col = jnp.asarray(bias, jnp.float32).reshape(Cout, 1)  # (Cout, 1)

    # Lane-dense M tiling: tile is a multiple of 128, as big as reasonable.
    M_pad_min = _round_up(M, 128)
    tM = min(512, M_pad_min)
    M_pad = _round_up(M, tM)
    if M_pad > M:
        patches = jnp.pad(patches, ((0, 0), (0, M_pad - M)))

    itemsize = jnp.dtype(x.dtype).itemsize
    cost = pl.CostEstimate(
        flops=2 * Cout * K * M_pad,
        transcendentals=0,
        bytes_accessed=(K * M_pad + Cout * M_pad) * itemsize + (Cout * K + Cout) * 4,
    )

    out_flat = pl.pallas_call(
        _conv_patch_matmul_kernel,
        out_shape=jax.ShapeDtypeStruct((Cout, M_pad), x.dtype),
        grid_spec=pltpu.PrefetchScalarGridSpec(
            num_scalar_prefetch=0,
            grid=(M_pad // tM,),
            in_specs=[
                pl.BlockSpec((Cout, K), lambda m: (0, 0)),   # weights, resident
                pl.BlockSpec((Cout, 1), lambda m: (0, 0)),   # bias, resident
                pl.BlockSpec((K, tM), lambda m: (0, m)),     # patch tile
            ],
            out_specs=pl.BlockSpec((Cout, tM), lambda m: (0, m)),
        ),
        compiler_params=pltpu.CompilerParams(
            dimension_semantics=("parallel",),
            vmem_limit_bytes=48 * 1024 * 1024,
        ),
        cost_estimate=cost,
    )(w_mat, b_col, patches)

    out = out_flat[:, :M].reshape(Cout, B, Do, Ho, Wo)
    return out.transpose(1, 0, 2, 3, 4)              # (B, Cout, Do, Ho, Wo)


def downsampling_conv_block_ref(x, weight, bias, stride=2):
    """Pure-JAX reference mirroring Conv3d(k=stride, stride, pad=0) + ReLU."""
    k = stride
    y = jax.lax.conv_general_dilated(
        x, weight, window_strides=(k, k, k), padding="VALID",
        dimension_numbers=("NCDHW", "OIDHW", "NCDHW"))
    y = y + bias[None, :, None, None, None]
    return jnp.maximum(y, 0.0)


if __name__ == "__main__":
    # Small shapes consistent with the module: n_filters_in=4, n_filters_out=8,
    # stride=2, spatial 8x8x8, batch 2.
    B, Cin, Cout = 2, 4, 8
    stride = 2
    D = H = W = 8

    key = jax.random.PRNGKey(0)
    kx, kw, kb = jax.random.split(key, 3)

    x = jax.random.normal(kx, (B, Cin, D, H, W), dtype=jnp.float32)
    fan_in = Cin * stride ** 3
    w = jax.random.normal(kw, (Cout, Cin, stride, stride, stride),
                          dtype=jnp.float32) * (1.0 / np.sqrt(fan_in))
    b = jax.random.normal(kb, (Cout,), dtype=jnp.float32) * 0.1

    out = downsampling_conv_block(x, w, b, stride=stride)
    out = jax.block_until_ready(out)

    ref = downsampling_conv_block_ref(x, w, b, stride=stride)
    np.testing.assert_allclose(np.asarray(out), np.asarray(ref),
                               rtol=1e-5, atol=1e-5)
    print("KERNEL_OK")
</pallas_src>

<mosaic_0001>
module attributes {stable_mosaic.version = 11 : i64} {
  func.func @_conv_patch_matmul_kernel(%arg0: i32, %arg1: memref<8x32xf32, #tpu.memory_space<vmem>>, %arg2: memref<8x1xf32, #tpu.memory_space<vmem>>, %arg3: memref<32x128xf32, #tpu.memory_space<vmem>>, %arg4: memref<8x128xf32, #tpu.memory_space<vmem>>) attributes {dimension_semantics = [#tpu.dimension_semantics<parallel>], iteration_bounds = array<i64: 1>, scalar_prefetch = 0 : i64, scratch_operands = 0 : i64, tpu.core_type = #tpu.core_type<tc>, window_params = [{pipeline_mode = #tpu.pipeline_mode<synchronous>, transform_indices = @transform_0, window_bounds = array<i64: 8, 32>}, {pipeline_mode = #tpu.pipeline_mode<synchronous>, transform_indices = @transform_1, window_bounds = array<i64: 8, 1>}, {transform_indices = @transform_2, window_bounds = array<i64: 32, 128>}, {transform_indices = @transform_3, window_bounds = array<i64: 8, 128>}]} {
    %c0 = arith.constant 0 : index
    %c0_0 = arith.constant 0 : index
    %0 = vector.load %arg1[%c0, %c0_0] : memref<8x32xf32, #tpu.memory_space<vmem>>, vector<8x32xf32>
    %c0_1 = arith.constant 0 : index
    %c0_2 = arith.constant 0 : index
    %1 = vector.load %arg3[%c0_1, %c0_2] : memref<32x128xf32, #tpu.memory_space<vmem>>, vector<32x128xf32>
    %cst = arith.constant dense<0.000000e+00> : vector<8x128xf32>
    %2 = tpu.matmul %0, %1, %cst {dimension_numbers = #tpu.dot_dimension_numbers<[1], [0], [0], [1], [0, 0, 1, 1], [], []>} : vector<8x32xf32>, vector<32x128xf32>, vector<8x128xf32> -> vector<8x128xf32>
    %c0_3 = arith.constant 0 : index
    %c0_4 = arith.constant 0 : index
    %3 = vector.load %arg2[%c0_3, %c0_4] : memref<8x1xf32, #tpu.memory_space<vmem>>, vector<8x1xf32>
    %4 = vector.broadcast %3 : vector<8x1xf32> to vector<8x128xf32>
    %5 = arith.addf %2, %4 : vector<8x128xf32>
    %cst_5 = arith.constant 0.000000e+00 : f32
    %6 = vector.broadcast %cst_5 : f32 to vector<8x128xf32>
    %7 = arith.maximumf %5, %6 : vector<8x128xf32>
    %c0_6 = arith.constant 0 : index
    %c0_7 = arith.constant 0 : index
    %8 = vector.load %arg4[%c0_6, %c0_7] : memref<8x128xf32, #tpu.memory_space<vmem>>, vector<8x128xf32>
    tpu.vector_store %arg4[%c0_6, %c0_7], %7 {strides = array<i32>} : memref<8x128xf32, #tpu.memory_space<vmem>>, vector<8x128xf32>,
    return
  }
  func.func @transform_0(%arg0: i32) -> (i32, i32) {
    %c0_i32 = arith.constant 0 : i32
    %c0_i32_0 = arith.constant 0 : i32
    %c0_i32_1 = arith.constant 0 : i32
    return %c0_i32, %c0_i32_0 : i32, i32
  }
  func.func @transform_1(%arg0: i32) -> (i32, i32) {
    %c0_i32 = arith.constant 0 : i32
    %c0_i32_0 = arith.constant 0 : i32
    %c0_i32_1 = arith.constant 0 : i32
    return %c0_i32, %c0_i32_0 : i32, i32
  }
  func.func @transform_2(%arg0: i32) -> (i32, i32) {
    %c0_i32 = arith.constant 0 : i32
    %c0_i32_0 = arith.constant 0 : i32
    return %c0_i32, %arg0 : i32, i32
  }
  func.func @transform_3(%arg0: i32) -> (i32, i32) {
    %c0_i32 = arith.constant 0 : i32
    %c0_i32_0 = arith.constant 0 : i32
    return %c0_i32, %arg0 : i32, i32
  }
}

</mosaic_0001>

<llo_original>
// kernel: tpu_custom_call.1
$region0: #{tpu_custom_call.1}
  #allocation0 [shape = 'u32[]', space=smem, size = 0x4, offset = 0x4, fixed_abs, tag = 'smem constant byte address 0x4 - core index']
  #allocation1 [shape = 'u32[72,128]{1,0:T(1,128)}', space=vmem, size = 0x9000, scoped, tag = 'internal scratch']
  %s0 = inlined_call_operand.vmem [shape: f32[8,32], index: 0, kind: input, shape index: {}]
  %s1 = inlined_call_operand.vmem [shape: f32[8,1], index: 1, kind: input, shape index: {}]
  %s2 = inlined_call_operand.hbm [shape: f32[32,128], index: 2, kind: input, shape index: {}]
  %s3 = inlined_call_operand.hbm [shape: f32[8,128], index: 3, kind: output, shape index: {}]
  %s4 = sld [smem:[#allocation0]]
  $region26: #{tpu_custom_call.1} parent=0
    _
  %s6 = ssub.s32 1, %s4
  %s7 = scalar_select 0, %s6, %s4
  $region1: #{tpu_custom_call.1} parent=0
    #allocation2 [shape = 'u8[16384]{0}', space=vmem, size = 0x4000, scoped, tag = 'input window, operand 2, single buffered']
    #allocation3 [shape = 's32[1]{0}', space=sflag, size = 0x4, scoped, tag = 'scoped memory for tpu_custom_call.1']
    #allocation4 [shape = 's32[1]{0}', space=sflag, size = 0x4, scoped, tag = 'scoped memory for tpu_custom_call.1']
    #allocation5 [shape = 'u8[4096]{0}', space=vmem, size = 0x1000, scoped, tag = 'output window, operand 0, single buffered']
    %8 = vsyncpa [#allocation3], 0
    %9 = vsyncpa [#allocation4], 0
    // Predicated region
    $region2: #{tpu_custom_call.1} parent=1 // pred_check
      _
    $region3: #{tpu_custom_call.1} parent=1 // pred_check_branch
      %11 = sbr.rel (0) target = $region5
    $region4: #{tpu_custom_call.1} parent=1 // pred_region
      _
    $region5: #{tpu_custom_call.1} parent=1 // pred_fallthru
      _
    // Predicated region
    $region6: #{tpu_custom_call.1} parent=1 // pred_check
      _
    $region7: #{tpu_custom_call.1} parent=1 // pred_check_branch
      %13 = sbr.rel (0) target = $region9
    $region8: #{tpu_custom_call.1} parent=1 // pred_region
      _
    $region9: #{tpu_custom_call.1} parent=1 // pred_fallthru
      _
    // Predicated region
    $region10: #{tpu_custom_call.1} parent=1 // pred_check
      _
    $region11: #{tpu_custom_call.1} parent=1 // pred_check_branch
      %15 = sbr.rel (0) target = $region13
    $region12: #{tpu_custom_call.1} parent=1 // pred_region
      %17 = vsyncadd [#allocation3], 0
      %s18 = sshll.u32 %s2, 4
      %s19 = int_to_ptr.hbm [resolvable:$true] %s18
      %s20 = sshll.u32 [#allocation2], 4
      %s21 = int_to_ptr.vmem [resolvable:$true] %s20
      %26 = dma.hbm_to_vmem [thread:$0]  %s19, 512, %s21, [#allocation3], 128, 128, 8
    $region13: #{tpu_custom_call.1} parent=1 // pred_fallthru
      _
    // Predicated region
    $region14: #{tpu_custom_call.1} parent=1 // pred_check
      _
    $region15: #{tpu_custom_call.1} parent=1 // pred_check_branch
      %28 = sbr.rel (0) target = $region17
    $region16: #{tpu_custom_call.1} parent=1 // pred_region
      %30 = dma.done [#allocation3], 512
    $region17: #{tpu_custom_call.1} parent=1 // pred_fallthru
      _
    %v31 = vld [vmem:[%s0] sm:$0xff]
    %v32 = vld [vmem:[#allocation2] sm:$0xff]
    %v33 = vld [vmem:[#allocation2 + $0x8] sm:$0xff]
    %v34 = vld [vmem:[#allocation2 + $0x10] sm:$0xff]
    %v35 = vld [vmem:[#allocation2 + $0x18] sm:$0xff]
    %v36 = vld [vmem:[%s1] sm:$0xff]
    %38 = vset.pattern.permute.xlu0 0
    %39 = vperm.xlu0 %38, %v36
    %v40 = vpop.permute.xlu0 %39
    %vm42 = vcmask 261120
    %v44 = vsel %vm42, %v31, 0
    %46 = vmatpush.msra.mxu0 0.0
    %47 = vmatpush.msra.mxu0 0.0
    %48 = vmatpush.msra.mxu0 0.0
    %49 = vmatpush.msra.mxu0 0.0
    %50 = vmatpush.msra.mxu0 0.0
    %51 = vmatpush.msra.mxu0 0.0
    %52 = vmatpush.msra.mxu0 0.0
    %53 = vmatpush.msra.mxu0 0.0
    %54 = vmatpush.msra.mxu0 0.0
    %55 = vmatpush.msra.mxu0 0.0
    %56 = vmatpush.msra.mxu0 0.0
    %57 = vmatpush.msra.mxu0 0.0
    %58 = vmatpush.msra.mxu0 %v35
    %59 = vmatpush.msra.mxu0 %v34
    %60 = vmatpush.msra.mxu0 %v33
    %61 = vmatpush.msra.mxu0 %v32
    %62 = vmatmul.f32.gmra.mxu0 %v44
    %v63 = vpop.f32.mrf.mxu0
    %v64 = vadd.f32 %v40, %v63
    %65 = vdwg.mxu0
    %v66 = vmax.f32 %v64, 0.0
    %67 = vst [vmem:[#allocation5] sm:$0xff] %v66
    // Predicated region
    $region18: #{tpu_custom_call.1} parent=1 // pred_check
      _
    $region19: #{tpu_custom_call.1} parent=1 // pred_check_branch
      %69 = sbr.rel (0) target = $region21
    $region20: #{tpu_custom_call.1} parent=1 // pred_region
      %71 = vsyncadd [#allocation4], 0
      %s73 = sshll.u32 [#allocation5], 4
      %s74 = int_to_ptr.vmem [resolvable:$true] %s73
      %s75 = sshll.u32 %s3, 4
      %s76 = int_to_ptr.hbm [resolvable:$true] %s75
      %78 = dma.vmem_to_hbm [thread:$0]  %s74, 128, %s76, [#allocation4]
    $region21: #{tpu_custom_call.1} parent=1 // pred_fallthru
      _
    // Predicated region
    $region22: #{tpu_custom_call.1} parent=1 // pred_check
      _
    $region23: #{tpu_custom_call.1} parent=1 // pred_check_branch
      %80 = sbr.rel (0) target = $region25
    $region24: #{tpu_custom_call.1} parent=1 // pred_region
      %82 = dma.done [#allocation4], 128
    $region25: #{tpu_custom_call.1} parent=1 // pred_fallthru
      _
    %83 = vsyncpa [#allocation3], 1
    %84 = vsyncpa [#allocation4], 1

</llo_original>
